<compile_context>
chip_gen: v5e
topology: v5e:2x2
jax: 0.10.0
libtpu: 0.0.40
codegen_flags: <defaults>
</compile_context>

<pallas_src>
import functools

import jax
import jax.numpy as jnp
from jax.experimental import pallas as pl
from jax.experimental.pallas import tpu as pltpu


def _round_up(x, m):
    return ((x + m - 1) // m) * m


# --------------------------------------------------------------------------
# Fast path: single column block — whole (normalized) teacher resident in VMEM
# --------------------------------------------------------------------------
def _fast_kernel(s_ref, t_ref, loss_ref, *, valid_b, blk):
    i = pl.program_id(0)
    # (blk, D) x (B_pad, D) contracted on the feature dim -> (blk, B_pad).
    logits = jax.lax.dot_general(
        s_ref[...], t_ref[...], (((1,), (1,)), ((), ())),
        preferred_element_type=jnp.float32)
    bp = logits.shape[1]

    col = jax.lax.broadcasted_iota(jnp.int32, (blk, bp), 1)
    row = i * blk + jax.lax.broadcasted_iota(jnp.int32, (blk, bp), 0)

    # Mask padded teacher columns out of the softmax.
    logits = jnp.where(col < valid_b, logits, jnp.float32(-jnp.inf))

    m = jnp.max(logits, axis=1, keepdims=True)
    l = jnp.sum(jnp.exp(logits - m), axis=1, keepdims=True)
    # Positive (diagonal) logit extracted from the same MXU result.
    diag = jnp.sum(jnp.where(col == row, logits, jnp.float32(0.0)),
                   axis=1, keepdims=True)

    loss_ref[...] = -(diag - m - jnp.log(l))


# --------------------------------------------------------------------------
# Streaming path: flash-style online log-sum-exp over column blocks
# --------------------------------------------------------------------------
def _stream_kernel(s_ref, t_ref, loss_ref, m_scr, l_scr, d_scr, *,
                   valid_b, blk):
    i = pl.program_id(0)          # row (student / anchor) block
    j = pl.program_id(1)          # col (teacher / contrast) block, innermost

    @pl.when(j == 0)
    def _init():
        m_scr[...] = jnp.full_like(m_scr, -jnp.inf)
        l_scr[...] = jnp.zeros_like(l_scr)
        d_scr[...] = jnp.zeros_like(d_scr)

    logits = jax.lax.dot_general(
        s_ref[...], t_ref[...], (((1,), (1,)), ((), ())),
        preferred_element_type=jnp.float32)          # (blk, blk)

    col = j * blk + jax.lax.broadcasted_iota(jnp.int32, (blk, blk), 1)
    logits = jnp.where(col < valid_b, logits, jnp.float32(-jnp.inf))

    # Diagonal (positive) logit lives in the j == i block (row/col tiles are
    # equal-sized); extract it from the MXU tile so it matches the LSE inputs.
    @pl.when(j == i)
    def _diag():
        row = i * blk + jax.lax.broadcasted_iota(jnp.int32, (blk, blk), 0)
        d_scr[...] = jnp.sum(jnp.where(col == row, logits, jnp.float32(0.0)),
                             axis=1, keepdims=True)

    # Online (flash-style) log-sum-exp update.  Every column block contains at
    # least one unmasked column (padding < blk), so m_new is always finite.
    m_prev = m_scr[...]
    m_new = jnp.maximum(m_prev, jnp.max(logits, axis=1, keepdims=True))
    l_scr[...] = (l_scr[...] * jnp.exp(m_prev - m_new)
                  + jnp.sum(jnp.exp(logits - m_new), axis=1, keepdims=True))
    m_scr[...] = m_new

    @pl.when(j == pl.num_programs(1) - 1)
    def _fin():
        loss_ref[...] = -(d_scr[...] - m_scr[...] - jnp.log(l_scr[...]))


# --------------------------------------------------------------------------
# Wrapper
# --------------------------------------------------------------------------
def ctaod_con_loss(s_box_features, t_box_features, temperature=0.07,
                   matmul_dtype=None, block=None, force_streaming=False):
    B, D = s_box_features.shape
    eps = jnp.float32(1e-12)
    inv_t = jnp.float32(1.0 / temperature)

    # L2-normalize once (trivial O(B*D)); fold 1/T into the student rows so the
    # kernel never touches the logits with a divide.  rsqrt(max(||x||^2, eps^2))
    # == 1 / max(||x||, eps)  ==  F.normalize semantics.
    s32 = s_box_features.astype(jnp.float32)
    t32 = t_box_features.astype(jnp.float32)
    s_n = s32 * (jax.lax.rsqrt(
        jnp.maximum(jnp.sum(s32 * s32, axis=1, keepdims=True), eps * eps))
        * inv_t)
    t_n = t32 * jax.lax.rsqrt(
        jnp.maximum(jnp.sum(t32 * t32, axis=1, keepdims=True), eps * eps))

    # bf16 MXU operands by default (bf16-native MXUs; f32 matmul is multi-pass
    # and v7x's MXU has no f32 path).  f32 accumulation is always used.
    mm_dtype = jnp.bfloat16 if matmul_dtype is None else matmul_dtype
    mm_bytes = 2 if mm_dtype == jnp.bfloat16 else 4
    s_n = s_n.astype(mm_dtype)
    t_n = t_n.astype(mm_dtype)

    # ---- tiling ----------------------------------------------------------
    if block is None:
        blk = min(512, _round_up(B, 8))
    else:
        blk = max(8, _round_up(block, 8))
        blk = min(blk, _round_up(B, 8))
    b_pad = _round_up(B, blk)
    # v7x has 2 TensorCores: make the "parallel" row axis >= 2 blocks when the
    # problem is big enough to benefit.
    if block is None and b_pad // blk == 1 and b_pad >= 256:
        blk = _round_up(-(-B // 2), 8)     # ceil(B/2), multiple of 8
        b_pad = 2 * blk
    n_row = b_pad // blk

    if b_pad != B:
        pad = b_pad - B
        s_n = jnp.pad(s_n, ((0, pad), (0, 0)))
        t_n = jnp.pad(t_n, ((0, pad), (0, 0)))

    # Fast path when the f32 logits tile + resident teacher + student tiles
    # (double-buffered) comfortably fit VMEM (conservative for v7x's 64 MiB).
    fast_bytes = (blk * b_pad * 4
                  + 2 * b_pad * D * mm_bytes
                  + 2 * blk * D * mm_bytes)
    use_fast = (not force_streaming) and fast_bytes <= (24 << 20)

    vmem_limit = 48 * 1024 * 1024

    if use_fast:
        kernel = functools.partial(_fast_kernel, valid_b=B, blk=blk)
        per_row = pl.pallas_call(
            kernel,
            out_shape=jax.ShapeDtypeStruct((b_pad, 1), jnp.float32),
            grid_spec=pltpu.PrefetchScalarGridSpec(
                num_scalar_prefetch=0,
                grid=(n_row,),
                in_specs=[
                    pl.BlockSpec((blk, D), lambda i: (i, 0)),     # student rows
                    pl.BlockSpec((b_pad, D), lambda i: (0, 0)),   # whole teacher
                ],
                out_specs=pl.BlockSpec((blk, 1), lambda i: (i, 0))),
            compiler_params=pltpu.CompilerParams(
                dimension_semantics=("parallel",),
                vmem_limit_bytes=vmem_limit),
        )(s_n, t_n)
    else:
        kernel = functools.partial(_stream_kernel, valid_b=B, blk=blk)
        per_row = pl.pallas_call(
            kernel,
            out_shape=jax.ShapeDtypeStruct((b_pad, 1), jnp.float32),
            grid_spec=pltpu.PrefetchScalarGridSpec(
                num_scalar_prefetch=0,
                grid=(n_row, n_row),
                in_specs=[
                    pl.BlockSpec((blk, D), lambda i, j: (i, 0)),  # student
                    pl.BlockSpec((blk, D), lambda i, j: (j, 0)),  # teacher
                ],
                out_specs=pl.BlockSpec((blk, 1), lambda i, j: (i, 0)),
                scratch_shapes=[
                    pltpu.VMEM((blk, 1), jnp.float32),   # running row max
                    pltpu.VMEM((blk, 1), jnp.float32),   # running sum-exp
                    pltpu.VMEM((blk, 1), jnp.float32),   # diagonal logit
                ]),
            compiler_params=pltpu.CompilerParams(
                dimension_semantics=("parallel", "arbitrary"),
                vmem_limit_bytes=vmem_limit),
        )(s_n, t_n)

    loss = per_row[:B, 0]
    m = jnp.mean(loss)
    # Reproduce the module's NaN guard literally (value-level no-op: NaN * 0
    # stays NaN).
    m = jnp.where(jnp.isnan(m), jnp.mean(loss * jnp.float32(0.0)), m)
    return m


def _reference(s, t, temperature=0.07):
    # Pure-JAX reference mirroring the PyTorch module.
    eps = 1e-12
    s_n = s / jnp.maximum(jnp.linalg.norm(s, axis=1, keepdims=True), eps)
    t_n = t / jnp.maximum(jnp.linalg.norm(t, axis=1, keepdims=True), eps)
    logits = (s_n @ t_n.T) / temperature
    sm = logits - jnp.max(logits, axis=1, keepdims=True)
    log_prob = sm - jnp.log(jnp.sum(jnp.exp(sm), axis=1, keepdims=True))
    loss = -jnp.diagonal(log_prob)
    return jnp.mean(loss)


if __name__ == "__main__":
    key = jax.random.PRNGKey(0)
    k1, k2 = jax.random.split(key)
    B, D = 24, 32  # small synthetic shapes consistent with (batch, feature_dim)
    s_feat = jax.random.normal(k1, (B, D), dtype=jnp.float32)
    t_feat = jax.random.normal(k2, (B, D), dtype=jnp.float32)

    ref = _reference(s_feat, t_feat, 0.07)

    # Fast path, exact f32 MXU operands — tight tolerance.
    loss_f32 = jax.block_until_ready(
        ctaod_con_loss(s_feat, t_feat, 0.07, matmul_dtype=jnp.float32))
    assert jnp.allclose(loss_f32, ref, rtol=1e-4, atol=1e-4), (loss_f32, ref)

    # Streaming (flash-LSE) path, 3x3 grid, exact f32 operands — tight.
    loss_stream = jax.block_until_ready(
        ctaod_con_loss(s_feat, t_feat, 0.07, matmul_dtype=jnp.float32,
                       block=8, force_streaming=True))
    assert jnp.allclose(loss_stream, ref, rtol=1e-4, atol=1e-4), (loss_stream, ref)

    # Non-divisible batch (exercises padding + column masking) on both paths.
    s2, t2 = s_feat[:21], t_feat[:21]
    ref2 = _reference(s2, t2, 0.07)
    loss2_fast = jax.block_until_ready(
        ctaod_con_loss(s2, t2, 0.07, matmul_dtype=jnp.float32))
    assert jnp.allclose(loss2_fast, ref2, rtol=1e-4, atol=1e-4), (loss2_fast, ref2)
    loss2_stream = jax.block_until_ready(
        ctaod_con_loss(s2, t2, 0.07, matmul_dtype=jnp.float32,
                       block=8, force_streaming=True))
    assert jnp.allclose(loss2_stream, ref2, rtol=1e-4, atol=1e-4), (loss2_stream, ref2)

    # Default path (bf16 MXU operands) — looser tolerance for bf16 operands.
    loss_bf16 = jax.block_until_ready(ctaod_con_loss(s_feat, t_feat, 0.07))
    assert jnp.allclose(loss_bf16, ref, rtol=5e-2, atol=5e-2), (loss_bf16, ref)

    print("KERNEL_OK")
</pallas_src>

<mosaic_0001>
module attributes {stable_mosaic.version = 11 : i64} {
  func.func @_fast_kernel(%arg0: i32, %arg1: memref<24x32xf32, #tpu.memory_space<vmem>>, %arg2: memref<24x32xf32, #tpu.memory_space<vmem>>, %arg3: memref<24x1xf32, #tpu.memory_space<vmem>>) attributes {dimension_semantics = [#tpu.dimension_semantics<parallel>], iteration_bounds = array<i64: 1>, scalar_prefetch = 0 : i64, scratch_operands = 0 : i64, tpu.core_type = #tpu.core_type<tc>, window_params = [{transform_indices = @transform_0, window_bounds = array<i64: 24, 32>}, {pipeline_mode = #tpu.pipeline_mode<synchronous>, transform_indices = @transform_1, window_bounds = array<i64: 24, 32>}, {transform_indices = @transform_2, window_bounds = array<i64: 24, 1>}]} {
    %c0 = arith.constant 0 : index
    %c0_0 = arith.constant 0 : index
    %0 = vector.load %arg1[%c0, %c0_0] : memref<24x32xf32, #tpu.memory_space<vmem>>, vector<24x32xf32>
    %c0_1 = arith.constant 0 : index
    %c0_2 = arith.constant 0 : index
    %1 = vector.load %arg2[%c0_1, %c0_2] : memref<24x32xf32, #tpu.memory_space<vmem>>, vector<24x32xf32>
    %cst = arith.constant dense<0.000000e+00> : vector<24x24xf32>
    %2 = tpu.matmul %0, %1, %cst {dimension_numbers = #tpu.dot_dimension_numbers<[1], [1], [0], [0], [0, 0, 1, 0], [], []>} : vector<24x32xf32>, vector<24x32xf32>, vector<24x24xf32> -> vector<24x24xf32>
    %3 = tpu.iota {dimensions = array<i32: 1>} : vector<24x24xi32>
    %c24_i32 = arith.constant 24 : i32
    %4 = arith.muli %arg0, %c24_i32 : i32
    %5 = tpu.iota {dimensions = array<i32: 0>} : vector<24x24xi32>
    %6 = vector.broadcast %4 : i32 to vector<24x24xi32>
    %7 = arith.addi %6, %5 : vector<24x24xi32>
    %c24_i32_3 = arith.constant 24 : i32
    %8 = vector.broadcast %c24_i32_3 : i32 to vector<24x24xi32>
    %9 = arith.cmpi slt, %3, %8 : vector<24x24xi32>
    %cst_4 = arith.constant 0xFF800000 : f32
    %10 = vector.broadcast %cst_4 : f32 to vector<24x24xf32>
    %11 = arith.select %9, %2, %10 : vector<24x24xi1>, vector<24x24xf32>
    %cst_5 = arith.constant dense<0xFF800000> : vector<24xf32>
    %12 = vector.multi_reduction <maximumf>, %11, %cst_5 [1] : vector<24x24xf32> to vector<24xf32>
    %13 = vector.shape_cast %12 : vector<24xf32> to vector<24x1xf32>
    %14 = vector.broadcast %13 : vector<24x1xf32> to vector<24x24xf32>
    %15 = arith.subf %11, %14 : vector<24x24xf32>
    %16 = math.exp %15 : vector<24x24xf32>
    %cst_6 = arith.constant dense<0.000000e+00> : vector<24xf32>
    %17 = vector.multi_reduction <add>, %16, %cst_6 [1] : vector<24x24xf32> to vector<24xf32>
    %18 = vector.shape_cast %17 : vector<24xf32> to vector<24x1xf32>
    %19 = arith.cmpi eq, %3, %7 : vector<24x24xi32>
    %cst_7 = arith.constant 0.000000e+00 : f32
    %20 = vector.broadcast %cst_7 : f32 to vector<24x24xf32>
    %21 = arith.select %19, %11, %20 : vector<24x24xi1>, vector<24x24xf32>
    %cst_8 = arith.constant dense<0.000000e+00> : vector<24xf32>
    %22 = vector.multi_reduction <add>, %21, %cst_8 [1] : vector<24x24xf32> to vector<24xf32>
    %23 = vector.shape_cast %22 : vector<24xf32> to vector<24x1xf32>
    %24 = arith.subf %23, %13 : vector<24x1xf32>
    %25 = math.log %18 : vector<24x1xf32>
    %26 = arith.subf %24, %25 : vector<24x1xf32>
    %cst_9 = arith.constant 0.000000e+00 : f32
    %27 = vector.broadcast %cst_9 : f32 to vector<24x1xf32>
    %28 = arith.subf %27, %26 : vector<24x1xf32>
    %c0_10 = arith.constant 0 : index
    %c0_11 = arith.constant 0 : index
    %29 = vector.load %arg3[%c0_10, %c0_11] : memref<24x1xf32, #tpu.memory_space<vmem>>, vector<24x1xf32>
    tpu.vector_store %arg3[%c0_10, %c0_11], %28 {strides = array<i32>} : memref<24x1xf32, #tpu.memory_space<vmem>>, vector<24x1xf32>,
    return
  }
  func.func @transform_0(%arg0: i32) -> (i32, i32) {
    %c0_i32 = arith.constant 0 : i32
    %c0_i32_0 = arith.constant 0 : i32
    return %arg0, %c0_i32 : i32, i32
  }
  func.func @transform_1(%arg0: i32) -> (i32, i32) {
    %c0_i32 = arith.constant 0 : i32
    %c0_i32_0 = arith.constant 0 : i32
    %c0_i32_1 = arith.constant 0 : i32
    return %c0_i32, %c0_i32_0 : i32, i32
  }
  func.func @transform_2(%arg0: i32) -> (i32, i32) {
    %c0_i32 = arith.constant 0 : i32
    %c0_i32_0 = arith.constant 0 : i32
    return %arg0, %c0_i32 : i32, i32
  }
}

</mosaic_0001>

<llo_original>
// kernel: tpu_custom_call.1
$region0: #{tpu_custom_call.1}
  #allocation0 [shape = 'u32[]', space=smem, size = 0x4, offset = 0x4, fixed_abs, tag = 'smem constant byte address 0x4 - core index']
  #allocation1 [shape = 'u32[72,128]{1,0:T(1,128)}', space=vmem, size = 0x9000, scoped, tag = 'internal scratch']
  %s0 = inlined_call_operand.hbm [shape: f32[24,32], index: 0, kind: input, shape index: {}]
  %s1 = inlined_call_operand.hbm [shape: f32[24,32], index: 1, kind: input, shape index: {}]
  %s2 = inlined_call_operand.vmem [shape: f32[24,1], index: 2, kind: output, shape index: {}]
  %s3 = sld [smem:[#allocation0]]
  $region26: #{tpu_custom_call.1} parent=0
    _
  %s5 = ssub.s32 1, %s3
  %s6 = scalar_select 0, %s5, %s3
  $region1: #{tpu_custom_call.1} parent=0
    #allocation2 [shape = 'u8[12288]{0}', space=vmem, size = 0x3000, scoped, tag = 'input window, operand 0, single buffered']
    #allocation3 [shape = 's32[1]{0}', space=sflag, size = 0x4, scoped, tag = 'scoped memory for tpu_custom_call.1']
    #allocation4 [shape = 'u8[12288]{0}', space=vmem, size = 0x3000, scoped, tag = 'input window, operand 1, single buffered']
    #allocation5 [shape = 's32[1]{0}', space=sflag, size = 0x4, scoped, tag = 'scoped memory for tpu_custom_call.1']
    %7 = vsyncpa [#allocation3], 0
    %8 = vsyncpa [#allocation5], 0
    // Predicated region
    $region2: #{tpu_custom_call.1} parent=1 // pred_check
      _
    $region3: #{tpu_custom_call.1} parent=1 // pred_check_branch
      %10 = sbr.rel (0) target = $region5
    $region4: #{tpu_custom_call.1} parent=1 // pred_region
      %12 = vsyncadd [#allocation3], 0
      %s13 = sshll.u32 %s0, 4
      %s14 = int_to_ptr.hbm [resolvable:$true] %s13
      %s15 = sshll.u32 [#allocation2], 4
      %s16 = int_to_ptr.vmem [resolvable:$true] %s15
      %21 = dma.hbm_to_vmem [thread:$0]  %s14, 384, %s16, [#allocation3], 128, 128, 8
    $region5: #{tpu_custom_call.1} parent=1 // pred_fallthru
      _
    // Predicated region
    $region6: #{tpu_custom_call.1} parent=1 // pred_check
      _
    $region7: #{tpu_custom_call.1} parent=1 // pred_check_branch
      %23 = sbr.rel (0) target = $region9
    $region8: #{tpu_custom_call.1} parent=1 // pred_region
      %25 = vsyncadd [#allocation5], 0
      %s26 = sshll.u32 %s1, 4
      %s27 = int_to_ptr.hbm [resolvable:$true] %s26
      %s28 = sshll.u32 [#allocation4], 4
      %s29 = int_to_ptr.vmem [resolvable:$true] %s28
      %34 = dma.hbm_to_vmem [thread:$0]  %s27, 384, %s29, [#allocation5], 128, 128, 8
    $region9: #{tpu_custom_call.1} parent=1 // pred_fallthru
      _
    // Predicated region
    $region10: #{tpu_custom_call.1} parent=1 // pred_check
      _
    $region11: #{tpu_custom_call.1} parent=1 // pred_check_branch
      %36 = sbr.rel (0) target = $region13
    $region12: #{tpu_custom_call.1} parent=1 // pred_region
      %38 = dma.done [#allocation3], 384
    $region13: #{tpu_custom_call.1} parent=1 // pred_fallthru
      _
    // Predicated region
    $region14: #{tpu_custom_call.1} parent=1 // pred_check
      _
    $region15: #{tpu_custom_call.1} parent=1 // pred_check_branch
      %40 = sbr.rel (0) target = $region17
    $region16: #{tpu_custom_call.1} parent=1 // pred_region
      %42 = dma.done [#allocation5], 384
    $region17: #{tpu_custom_call.1} parent=1 // pred_fallthru
      _
    %v43 = vld [vmem:[#allocation2] sm:$0xff]
    %v44 = vld [vmem:[#allocation2 + $0x8] sm:$0xff]
    %v45 = vld [vmem:[#allocation2 + $0x10] sm:$0xff]
    %v46 = vld [vmem:[#allocation4] sm:$0xff]
    %v47 = vld [vmem:[#allocation4 + $0x8] sm:$0xff]
    %v48 = vld [vmem:[#allocation4 + $0x10] sm:$0xff]
    %vm49 = vcmask 261120
    %v51 = vsel %vm49, %v43, 0
    %v54 = vsel %vm49, %v44, 0
    %v57 = vsel %vm49, %v45, 0
    %v60 = vsel %vm49, %v46, 0
    %v63 = vsel %vm49, %v47, 0
    %v66 = vsel %vm49, %v48, 0
    %68 = vmatpush.xpose.msra.mxu0 0.0
    %69 = vmatpush.xpose.msra.mxu0 0.0
    %70 = vmatpush.xpose.msra.mxu0 0.0
    %71 = vmatpush.xpose.msra.mxu0 0.0
    %72 = vmatpush.xpose.msra.mxu0 0.0
    %73 = vmatpush.xpose.msra.mxu0 0.0
    %74 = vmatpush.xpose.msra.mxu0 0.0
    %75 = vmatpush.xpose.msra.mxu0 0.0
    %76 = vmatpush.xpose.msra.mxu0 0.0
    %77 = vmatpush.xpose.msra.mxu0 0.0
    %78 = vmatpush.xpose.msra.mxu0 0.0
    %79 = vmatpush.xpose.msra.mxu0 0.0
    %80 = vmatpush.xpose.msra.mxu0 0.0
    %81 = vmatpush.xpose.msra.mxu0 %v66
    %82 = vmatpush.xpose.msra.mxu0 %v63
    %83 = vmatpush.xpose.msra.mxu0 %v60
    %84 = vmatmul.f32.gmra.mxu0 %v51
    %v85 = vpop.f32.mrf.mxu0
    %v86 = vadd.f32 0.0, %v85
    %87 = vmatmul.f32.gmra.mxu0 %v54
    %v88 = vpop.f32.mrf.mxu0
    %v89 = vadd.f32 0.0, %v88
    %90 = vmatmul.f32.gmra.mxu0 %v57
    %v91 = vpop.f32.mrf.mxu0
    %v92 = vadd.f32 0.0, %v91
    %93 = vdwg.mxu0
    %v94 = vlaneseq
    %v95 = vand.u32 %v94, 127
    %s96 = smul.u32 0, 24
    %v97 = vlaneseq
    %v98 = vshrl.u32 %v97, 7
    %v99 = vadd.s32 %v98, 8
    %v100 = vadd.s32 %v98, 16
    %v101 = vstv %s96
    %v102 = vadd.s32 %v101, %v98
    %v103 = vadd.s32 %v101, %v99
    %v104 = vadd.s32 %v101, %v100
    %vm105 = vcmp.lt.s32.totalorder %v95, 24
    %v106 = vsel %vm105, %v86, -inf
    %v107 = vsel %vm105, %v89, -inf
    %v108 = vsel %vm105, %v92, -inf
    %vm109 = vcmask 195584
    %v110 = vsel %vm109, %v106, -inf
    %111 = vmax.xlane.f32.xlu0 %v110
    %v112 = vpop.xlane.xlu0 %111
    %v113 = vsel %vm109, %v107, -inf
    %114 = vmax.xlane.f32.xlu0 %v113
    %v115 = vpop.xlane.xlu0 %114
    %v116 = vsel %vm109, %v108, -inf
    %117 = vmax.xlane.f32.xlu0 %v116
    %v118 = vpop.xlane.xlu0 %117
    %v119 = vsub.f32 %v106, %v112
    %v120 = vsub.f32 %v107, %v115
    %v121 = vsub.f32 %v108, %v118
    %v122 = vmul.f32 %v119, 1.442695
    %v123 = vpow.pop %v122
    %v124 = vmul.f32 %v120, 1.442695
    %v125 = vpow.pop %v124
    %v126 = vmul.f32 %v121, 1.442695
    %v127 = vpow.pop %v126
    %v128 = vsel %vm109, %v123, 0.0
    %129 = vadd.xlane.f32.xlu0 %v128
    %v130 = vpop.xlane.xlu0 %129
    %v131 = vsel %vm109, %v125, 0.0
    %132 = vadd.xlane.f32.xlu0 %v131
    %v133 = vpop.xlane.xlu0 %132
    %v134 = vsel %vm109, %v127, 0.0
    %135 = vadd.xlane.f32.xlu0 %v134
    %v136 = vpop.xlane.xlu0 %135
    %vm137 = vcmp.eq.s32.totalorder %v95, %v102
    %vm138 = vcmp.eq.s32.totalorder %v95, %v103
    %vm139 = vcmp.eq.s32.totalorder %v95, %v104
    %v140 = vsel %vm137, %v106, 0.0
    %v141 = vsel %vm138, %v107, 0.0
    %v142 = vsel %vm139, %v108, 0.0
    %v143 = vsel %vm109, %v140, 0.0
    %144 = vadd.xlane.f32.xlu0 %v143
    %v145 = vpop.xlane.xlu0 %144
    %v146 = vsel %vm109, %v141, 0.0
    %147 = vadd.xlane.f32.xlu0 %v146
    %v148 = vpop.xlane.xlu0 %147
    %v149 = vsel %vm109, %v142, 0.0
    %150 = vadd.xlane.f32.xlu0 %v149
    %v151 = vpop.xlane.xlu0 %150
    %v152 = vsub.f32 %v145, %v112
    %v153 = vsub.f32 %v148, %v115
    %v154 = vsub.f32 %v151, %v118
    %v155 = vlog2.pop %v130
    %v156 = vmul.f32 %v155, 0.6931472
    %v157 = vlog2.pop %v133
    %v158 = vmul.f32 %v157, 0.6931472
    %v159 = vlog2.pop %v136
    %v160 = vmul.f32 %v159, 0.6931472
    %v161 = vsub.f32 %v152, %v156
    %v162 = vsub.f32 %v153, %v158
    %v163 = vsub.f32 %v154, %v160
    %v164 = vsub.f32 0.0, %v161
    %v165 = vsub.f32 0.0, %v162
    %v166 = vsub.f32 0.0, %v163
    %vm167 = vcmask 7168
    %168 = vst.msk [vmem:[%s2] sm:$0xff] %vm167, %v164
    %169 = vst.msk [vmem:[%s2 + $0x8] sm:$0xff] %vm167, %v165
    %170 = vst.msk [vmem:[%s2 + $0x10] sm:$0xff] %vm167, %v166
    // Predicated region
    $region18: #{tpu_custom_call.1} parent=1 // pred_check
      _
    $region19: #{tpu_custom_call.1} parent=1 // pred_check_branch
      %172 = sbr.rel (0) target = $region21
    $region20: #{tpu_custom_call.1} parent=1 // pred_region
      _
    $region21: #{tpu_custom_call.1} parent=1 // pred_fallthru
      _
    // Predicated region
    $region22: #{tpu_custom_call.1} parent=1 // pred_check
      _
    $region23: #{tpu_custom_call.1} parent=1 // pred_check_branch
      %174 = sbr.rel (0) target = $region25
    $region24: #{tpu_custom_call.1} parent=1 // pred_region
      _
    $region25: #{tpu_custom_call.1} parent=1 // pred_fallthru
      _
    %175 = vsyncpa [#allocation3], 1
    %176 = vsyncpa [#allocation5], 1

</llo_original>
